<compile_context>
chip_gen: v5e
topology: v5e:2x2
jax: 0.10.0
libtpu: 0.0.40
codegen_flags: <defaults>
</compile_context>

<pallas_src>
import functools

import jax
import jax.numpy as jnp
from jax import lax
from jax.experimental import pallas as pl
from jax.experimental.pallas import tpu as pltpu


def _hard_thresh_kernel(x_ref, o_ref, *, lam_vals, lam_starts, tc):
    # x_ref / o_ref: (tn, tc, L) VMEM tiles.
    # lam_vals / lam_starts: static python tuples (one lambda + start-channel per group).
    x = x_ref[...]
    if len(lam_vals) == 1:
        lam = jnp.float32(lam_vals[0])
    else:
        # Per-row channel index of this tile; group boundaries are compile-time constants.
        c0 = pl.program_id(1) * tc
        ch = c0 + lax.broadcasted_iota(jnp.int32, (1, tc, 1), 1)
        lam = jnp.full((1, tc, 1), lam_vals[0], dtype=jnp.float32)
        for start, lv in zip(lam_starts[1:], lam_vals[1:]):
            lam = jnp.where(ch >= start, jnp.float32(lv), lam)
    keep = jnp.abs(x) > lam                     # strict '>' matches nn.Threshold(lam, 0)
    # TODO(synk): NaN inputs are zeroed here, whereas sign(NaN)*Threshold(|NaN|) propagates NaN.
    o_ref[...] = jnp.where(keep, x, jnp.zeros_like(x))


_TARGET_TILE_BYTES = 2 * 1024 * 1024   # ~2 MiB per x tile; with double-buffered in+out ≈ 8 MiB VMEM


def _choose_tiles(N, C, L, itemsize, target_tile_bytes):
    bytes_per_row = L * itemsize
    rows_budget = max(1, target_tile_bytes // bytes_per_row)
    # packed-sublane multiple for this dtype: f32 -> 8, bf16 -> 16, int8 -> 32
    sub = max(8, 32 // itemsize)
    if C <= rows_budget:
        tc = C                                   # full channel dim is always a legal block dim
    else:
        tc = max(sub, (rows_budget // sub) * sub)
    tn = min(N, max(1, rows_budget // tc))
    return tn, tc


def hard_thresh_pallas(x, lams, n_list=None, *, target_tile_bytes=_TARGET_TILE_BYTES):
    """x: (N, C, H, W). lams: float or list of floats. n_list: channel-group sizes along C."""
    N, C, H, W = x.shape
    if isinstance(lams, float):
        lams = [lams]
    lam_vals = tuple(float(l) for l in lams)
    if len(lam_vals) == 1:
        lam_starts = (0,)
    else:
        assert n_list is not None and sum(n_list) == C
        starts = [0]
        for n in n_list[:-1]:
            starts.append(starts[-1] + int(n))
        lam_starts = tuple(starts)

    L = H * W
    itemsize = jnp.dtype(x.dtype).itemsize
    tn, tc = _choose_tiles(N, C, L, itemsize, target_tile_bytes)

    n_tiles = pl.cdiv(N, tn)
    c_tiles = pl.cdiv(C, tc)
    Np, Cp = n_tiles * tn, c_tiles * tc

    x3 = x.reshape(N, C, L)
    if (Np, Cp) != (N, C):
        x3 = jnp.pad(x3, ((0, Np - N), (0, Cp - C), (0, 0)))

    kernel = functools.partial(
        _hard_thresh_kernel, lam_vals=lam_vals, lam_starts=lam_starts, tc=tc)

    out3 = pl.pallas_call(
        kernel,
        out_shape=jax.ShapeDtypeStruct((Np, Cp, L), x.dtype),
        grid_spec=pltpu.PrefetchScalarGridSpec(
            num_scalar_prefetch=0,
            grid=(n_tiles, c_tiles),
            in_specs=[pl.BlockSpec((tn, tc, L), lambda n, c: (n, c, 0))],
            out_specs=pl.BlockSpec((tn, tc, L), lambda n, c: (n, c, 0)),
        ),
        compiler_params=pltpu.CompilerParams(
            dimension_semantics=("parallel", "parallel")),
    )(x3)

    if (Np, Cp) != (N, C):
        out3 = out3[:N, :C]
    return out3.reshape(N, C, H, W)


def _reference(x, lams, n_list=None):
    # pure-JAX reference mirroring the PyTorch forward
    if isinstance(lams, float):
        lams = [lams]
    if len(lams) == 1:
        lam = lams[0]
        return jnp.sign(x) * jnp.where(jnp.abs(x) > lam, jnp.abs(x), 0.0)
    outs = []
    beg = 0
    for lam, n in zip(lams, n_list):
        xc = x[:, beg:beg + n]
        outs.append(jnp.sign(xc) * jnp.where(jnp.abs(xc) > lam, jnp.abs(xc), 0.0))
        beg += n
    return jnp.concatenate(outs, axis=1)


if __name__ == "__main__":
    key = jax.random.PRNGKey(0)

    # --- multi-threshold path: two channel groups with different lambdas ---
    N, C, H, W = 2, 4, 16, 16
    x = jax.random.normal(key, (N, C, H, W), dtype=jnp.float32)
    lams, n_list = [0.3, 0.7], [2, 2]
    out = jax.block_until_ready(hard_thresh_pallas(x, lams, n_list))
    ref = _reference(x, lams, n_list)
    assert out.shape == x.shape
    assert jnp.allclose(out, ref, atol=1e-6), "mismatch vs reference (multi lam)"

    # --- single-threshold path (lams is a float) ---
    out1 = jax.block_until_ready(hard_thresh_pallas(x, 0.5))
    ref1 = _reference(x, 0.5)
    assert jnp.allclose(out1, ref1, atol=1e-6), "mismatch vs reference (single lam)"

    # --- exercise the multi-tile / padded path with a tiny artificial tile budget ---
    x2 = jax.random.normal(jax.random.PRNGKey(1), (2, 12, 16, 16), dtype=jnp.float32)
    lams2, n_list2 = [0.2, 0.6], [5, 7]
    out2 = jax.block_until_ready(
        hard_thresh_pallas(x2, lams2, n_list2, target_tile_bytes=8 * 1024))
    ref2 = _reference(x2, lams2, n_list2)
    assert jnp.allclose(out2, ref2, atol=1e-6), "mismatch vs reference (tiled/padded)"

    print("KERNEL_OK")
</pallas_src>

<mosaic_0001>
module attributes {stable_mosaic.version = 11 : i64} {
  func.func @_hard_thresh_kernel(%arg0: i32, %arg1: i32, %arg2: memref<2x4x256xf32, #tpu.memory_space<vmem>>, %arg3: memref<2x4x256xf32, #tpu.memory_space<vmem>>) attributes {dimension_semantics = [#tpu.dimension_semantics<parallel>, #tpu.dimension_semantics<parallel>], iteration_bounds = array<i64: 1, 1>, scalar_prefetch = 0 : i64, scratch_operands = 0 : i64, tpu.core_type = #tpu.core_type<tc>, window_params = [{transform_indices = @transform_0, window_bounds = array<i64: 2, 4, 256>}, {transform_indices = @transform_1, window_bounds = array<i64: 2, 4, 256>}]} {
    %c0 = arith.constant 0 : index
    %c0_0 = arith.constant 0 : index
    %c0_1 = arith.constant 0 : index
    %0 = vector.load %arg2[%c0, %c0_0, %c0_1] : memref<2x4x256xf32, #tpu.memory_space<vmem>>, vector<2x4x256xf32>
    %c4_i32 = arith.constant 4 : i32
    %1 = arith.muli %arg1, %c4_i32 : i32
    %2 = tpu.iota {dimensions = array<i32: 1>} : vector<1x4x1xi32>
    %3 = vector.broadcast %1 : i32 to vector<1x4x1xi32>
    %4 = arith.addi %3, %2 : vector<1x4x1xi32>
    %cst = arith.constant 3.000000e-01 : f32
    %5 = vector.broadcast %cst : f32 to vector<1x4x1xf32>
    %c2_i32 = arith.constant 2 : i32
    %6 = vector.broadcast %c2_i32 : i32 to vector<1x4x1xi32>
    %7 = arith.cmpi sge, %4, %6 : vector<1x4x1xi32>
    %cst_2 = arith.constant 0.699999988 : f32
    %8 = vector.broadcast %cst_2 : f32 to vector<1x4x1xf32>
    %9 = arith.select %7, %8, %5 : vector<1x4x1xi1>, vector<1x4x1xf32>
    %10 = math.absf %0 : vector<2x4x256xf32>
    %11 = vector.broadcast %9 : vector<1x4x1xf32> to vector<2x4x256xf32>
    %12 = arith.cmpf ogt, %10, %11 : vector<2x4x256xf32>
    %cst_3 = arith.constant 0.000000e+00 : f32
    %13 = vector.broadcast %cst_3 : f32 to vector<2x4x256xf32>
    %14 = arith.select %12, %0, %13 : vector<2x4x256xi1>, vector<2x4x256xf32>
    %c0_4 = arith.constant 0 : index
    %c0_5 = arith.constant 0 : index
    %c0_6 = arith.constant 0 : index
    %15 = vector.load %arg3[%c0_4, %c0_5, %c0_6] : memref<2x4x256xf32, #tpu.memory_space<vmem>>, vector<2x4x256xf32>
    tpu.vector_store %arg3[%c0_4, %c0_5, %c0_6], %14 {strides = array<i32>} : memref<2x4x256xf32, #tpu.memory_space<vmem>>, vector<2x4x256xf32>,
    return
  }
  func.func @transform_0(%arg0: i32, %arg1: i32) -> (i32, i32, i32) {
    %c0_i32 = arith.constant 0 : i32
    %c0_i32_0 = arith.constant 0 : i32
    return %arg0, %arg1, %c0_i32 : i32, i32, i32
  }
  func.func @transform_1(%arg0: i32, %arg1: i32) -> (i32, i32, i32) {
    %c0_i32 = arith.constant 0 : i32
    %c0_i32_0 = arith.constant 0 : i32
    return %arg0, %arg1, %c0_i32 : i32, i32, i32
  }
}

</mosaic_0001>

<llo_original>
// kernel: tpu_custom_call.1
$region0: #{tpu_custom_call.1}
  #allocation0 [shape = 'u32[]', space=smem, size = 0x4, offset = 0x4, fixed_abs, tag = 'smem constant byte address 0x4 - core index']
  #allocation1 [shape = 'u32[72,128]{1,0:T(1,128)}', space=vmem, size = 0x9000, scoped, tag = 'internal scratch']
  %s0 = inlined_call_operand.hbm [shape: f32[2,4,256], index: 0, kind: input, shape index: {}]
  %s1 = inlined_call_operand.hbm [shape: f32[2,4,256], index: 1, kind: output, shape index: {}]
  %s2 = sld [smem:[#allocation0]]
  $region18: #{tpu_custom_call.1} parent=0
    _
  %s4 = ssub.s32 1, %s2
  %s5 = scalar_select 0, %s4, %s2
  $region1: #{tpu_custom_call.1} parent=0
    #allocation2 [shape = 'u8[8192]{0}', space=vmem, size = 0x2000, scoped, tag = 'input window, operand 0, single buffered']
    #allocation3 [shape = 's32[1]{0}', space=sflag, size = 0x4, scoped, tag = 'scoped memory for tpu_custom_call.1']
    #allocation4 [shape = 's32[1]{0}', space=sflag, size = 0x4, scoped, tag = 'scoped memory for tpu_custom_call.1']
    #allocation5 [shape = 'u8[8192]{0}', space=vmem, size = 0x2000, scoped, tag = 'output window, operand 0, single buffered']
    %6 = vsyncpa [#allocation3], 0
    %7 = vsyncpa [#allocation4], 0
    // Predicated region
    $region2: #{tpu_custom_call.1} parent=1 // pred_check
      _
    $region3: #{tpu_custom_call.1} parent=1 // pred_check_branch
      %9 = sbr.rel (0) target = $region5
    $region4: #{tpu_custom_call.1} parent=1 // pred_region
      %11 = vsyncadd [#allocation3], 0
      %s12 = sshll.u32 %s0, 4
      %s13 = int_to_ptr.hbm [resolvable:$true] %s12
      %s14 = sshll.u32 [#allocation2], 4
      %s15 = int_to_ptr.vmem [resolvable:$true] %s14
      %20 = dma.hbm_to_vmem [thread:$0]  %s13, 256, %s15, [#allocation3], 128, 128, 8
    $region5: #{tpu_custom_call.1} parent=1 // pred_fallthru
      _
    // Predicated region
    $region6: #{tpu_custom_call.1} parent=1 // pred_check
      _
    $region7: #{tpu_custom_call.1} parent=1 // pred_check_branch
      %22 = sbr.rel (0) target = $region9
    $region8: #{tpu_custom_call.1} parent=1 // pred_region
      %24 = dma.done [#allocation3], 256
    $region9: #{tpu_custom_call.1} parent=1 // pred_fallthru
      _
    %v25 = vld [vmem:[#allocation2] sm:$0xff]
    %v26 = vld [vmem:[#allocation2 + $0x8] sm:$0xff]
    %s27 = smul.u32 0, 4
    %v28 = vlaneseq
    %v29 = vshrl.u32 %v28, 7
    %v30 = vstv %s27
    %v31 = vadd.s32 %v30, %v29
    %vm32 = vcmp.ge.s32.totalorder %v31, 2
    %v33 = vsel %vm32, 0.7, 0.3
    %v34 = vand.u32 2147483647, %v25
    %v35 = vand.u32 2147483647, %v26
    %v38 = vunpack.c.l.s4 839922192
    %v39 = vunpack.c.0.s8 %v38
    %v40 = vperm.slane %v33, %v39
    %vm42 = vcmp.gt.f32.partialorder %v34, %v40
    %vm43 = vcmp.gt.f32.partialorder %v35, %v40
    %v44 = vsel %vm42, %v25, 0.0
    %v45 = vsel %vm43, %v26, 0.0
    %46 = vst [vmem:[#allocation5] sm:$0xff] %v44
    %47 = vst [vmem:[#allocation5 + $0x8] sm:$0xff] %v45
    // Predicated region
    $region10: #{tpu_custom_call.1} parent=1 // pred_check
      _
    $region11: #{tpu_custom_call.1} parent=1 // pred_check_branch
      %49 = sbr.rel (0) target = $region13
    $region12: #{tpu_custom_call.1} parent=1 // pred_region
      %51 = vsyncadd [#allocation4], 0
      %s52 = sshll.u32 [#allocation5], 4
      %s53 = int_to_ptr.vmem [resolvable:$true] %s52
      %s54 = sshll.u32 %s1, 4
      %s55 = int_to_ptr.hbm [resolvable:$true] %s54
      %60 = dma.vmem_to_hbm [thread:$0]  %s53, 256, %s55, [#allocation4], 128, 128, 8
    $region13: #{tpu_custom_call.1} parent=1 // pred_fallthru
      _
    // Predicated region
    $region14: #{tpu_custom_call.1} parent=1 // pred_check
      _
    $region15: #{tpu_custom_call.1} parent=1 // pred_check_branch
      %62 = sbr.rel (0) target = $region17
    $region16: #{tpu_custom_call.1} parent=1 // pred_region
      %64 = dma.done [#allocation4], 256
    $region17: #{tpu_custom_call.1} parent=1 // pred_fallthru
      _
    %65 = vsyncpa [#allocation3], 1
    %66 = vsyncpa [#allocation4], 1

</llo_original>
